<compile_context>
chip_gen: v7x
topology: tpu7x:2x2x1
jax: 0.10.0
libtpu: 0.0.40
codegen_flags: <defaults>
</compile_context>

<pallas_src>
import math

import jax
import jax.numpy as jnp
from jax.experimental import pallas as pl
from jax.experimental.pallas import tpu as pltpu

DDS = 1.0
DSD = 1.0
SS = 1.0


def _both_logic_kernel(l1_ref, l2_ref, lsame_ref, lsameT_ref, lsum9_ref, out_ref):
    """Processes one row-block of the n x n pair matrix.

    l1_ref, l2_ref : (10, BR, n)  digit logits, class-major / lane-dense
    lsame_ref      : (BR, n)      'same' relation logits (rows of the matrix)
    lsameT_ref     : (BR, n)      rows of the transposed 'same' matrix
    lsum9_ref      : (BR, n)      'sum9' relation logits
    out_ref        : (1, 8, 128)  per-block raw partial sums (lanes 0..3)
    """

    def softmax_cls(x):  # softmax over the class axis (axis 0), lane-dense
        m = jnp.max(x, axis=0, keepdims=True)
        e = jnp.exp(x - m)
        inv = 1.0 / jnp.sum(e, axis=0, keepdims=True)   # one divide, then mul
        return e * inv

    def sigmoid(x):  # numerically stable, single exp + single divide
        z = jnp.exp(-jnp.abs(x))
        r = 1.0 / (1.0 + z)
        return jnp.where(x >= 0, r, 1.0 - r)

    T = lambda a, b: a * b                    # product t-norm
    S = lambda a, b: a + b - a * b            # probabilistic sum
    I = lambda a, c: 1.0 - a + a * c          # Reichenbach implication

    p1 = softmax_cls(l1_ref[...])             # (10, BR, n)
    p2 = softmax_cls(l2_ref[...])             # (10, BR, n)
    psame = sigmoid(lsame_ref[...])           # (BR, n)   (computed once, reused)
    psameT = sigmoid(lsameT_ref[...])         # (BR, n)
    psum9 = sigmoid(lsum9_ref[...])           # (BR, n)

    psame_b = psame[None, :, :]               # broadcasts against (10, BR, n)

    # ---- RealLogic clauses 1 & 2 (fused elementwise, one reduction) ----
    # clause 1: digit(x)=d & digit(y)=d -> same(x, y)      (weight DDS = 1)
    # clause 2: digit(x)=d & same(x, y) -> digit(y)=d      (weight DSD = 1)
    fused = I(T(p1, p2), psame_b) + I(T(p1, psame_b), p2)   # (10, BR, n)
    s12 = jnp.sum(fused)

    # ---- RealLogic clause 3: same(x, y) -> same(y, x) ----
    s3 = jnp.sum(I(psame, psameT))

    # ---- Sum9Logic clause 1: exists y : sum9(x, y) ----
    s_exists = jnp.sum(jnp.max(psum9, axis=1, keepdims=True))

    # ---- Sum9Logic clause 2: sum9(x, y) -> OR_i digit(x)=i & digit(y)=9-i ----
    disjunct = jnp.zeros_like(psum9)
    for i in range(10):                       # static 10-step fold, full-width VPU
        disjunct = S(disjunct, T(p1[i], p2[9 - i]))
    s5 = jnp.sum(I(psum9, disjunct))

    # ---- emit raw partial sums (normalization happens in the wrapper) ----
    sub = jax.lax.broadcasted_iota(jnp.int32, out_ref.shape, 1)
    lane = jax.lax.broadcasted_iota(jnp.int32, out_ref.shape, 2)
    pos = sub * 128 + lane
    vals = jnp.where(pos == 0, s12,
           jnp.where(pos == 1, s3,
           jnp.where(pos == 2, s_exists,
           jnp.where(pos == 3, s5, 0.0))))
    out_ref[...] = vals.astype(jnp.float32)


def _pick_row_block(n):
    """Largest divisor of n (multiple of 8) so the biggest tile is ~2 MiB."""
    max_rows = max(8, (2 * 1024 * 1024) // (10 * n * 4))
    if n <= max_rows or n % 8 != 0:
        # TODO(synk): n not divisible by 8 (and huge) falls back to one block.
        return n
    br = (max_rows // 8) * 8
    while br >= 8:
        if n % br == 0:
            return br
        br -= 8
    return n


def both_logic(logits_1, logits_2, logits_same, logits_sum9):
    """Forward of BothLogic with writer=None. Returns a scalar loss."""
    N = logits_1.shape[0]
    n = int(math.isqrt(N))
    assert n * n == N, "batch must be a perfect square (pairwise grid)"

    f32 = jnp.float32
    # Layout plumbing (wrapper-side, outside the hot kernel):
    #   digits -> class-major, batch-matrix-minor lane-dense layout
    l1_t = jnp.transpose(logits_1.astype(f32).reshape(n, n, 10), (2, 0, 1))
    l2_t = jnp.transpose(logits_2.astype(f32).reshape(n, n, 10), (2, 0, 1))
    lsame_m = logits_same.astype(f32).reshape(n, n)
    lsame_mT = jnp.transpose(lsame_m)          # needed for the symmetry clause
    lsum9_m = logits_sum9.astype(f32).reshape(n, n)

    br = _pick_row_block(n)
    nb = n // br

    grid_spec = pltpu.PrefetchScalarGridSpec(
        num_scalar_prefetch=0,
        grid=(nb,),
        in_specs=[
            pl.BlockSpec((10, br, n), lambda i: (0, i, 0)),   # logits_1
            pl.BlockSpec((10, br, n), lambda i: (0, i, 0)),   # logits_2
            pl.BlockSpec((br, n), lambda i: (i, 0)),          # same matrix rows
            pl.BlockSpec((br, n), lambda i: (i, 0)),          # same^T matrix rows
            pl.BlockSpec((br, n), lambda i: (i, 0)),          # sum9 matrix rows
        ],
        out_specs=pl.BlockSpec((1, 8, 128), lambda i: (i, 0, 0)),
    )

    partials = pl.pallas_call(
        _both_logic_kernel,
        out_shape=jax.ShapeDtypeStruct((nb, 8, 128), jnp.float32),
        grid_spec=grid_spec,
        compiler_params=pltpu.CompilerParams(
            dimension_semantics=("parallel",),
            vmem_limit_bytes=32 * 1024 * 1024,
        ),
    )(l1_t, l2_t, lsame_m, lsame_mT, lsum9_m)

    # Tiny finalize in plain JAX: combine per-block raw sums, normalize, negate.
    sums = jnp.sum(partials, axis=(0, 1))      # (128,)
    s12, s3, s_exists, s5 = sums[0], sums[1], sums[2], sums[3]

    Nf = float(N)
    nf = float(n)
    rl12 = s12 / (10.0 * Nf)                   # rl1*DDS + rl2*DSD (both mean over N*10)
    rl3 = (s3 / Nf) * SS                       # mean over N
    same_loss = -(rl12 + rl3) / 3.0            # -A_clause(rl1, rl2, rl3)

    srl1 = s_exists / nf                       # mean of per-row existentials
    srl2 = s5 / Nf                             # mean over N
    sum9_loss = -(srl1 + srl2) / 2.0           # -A_clause_sum9(rl1, rl2)

    return same_loss + sum9_loss


if __name__ == "__main__":
    key = jax.random.PRNGKey(0)
    n = 4
    N = n * n  # 16 image pairs
    k1, k2, k3, k4 = jax.random.split(key, 4)
    logits_1 = jax.random.normal(k1, (N, 10), dtype=jnp.float32)
    logits_2 = jax.random.normal(k2, (N, 10), dtype=jnp.float32)
    logits_same = jax.random.normal(k3, (N, 1), dtype=jnp.float32)
    logits_sum9 = jax.random.normal(k4, (N, 1), dtype=jnp.float32)
    # labels_1/labels_2/labels_same/labels_sum9 feed only the gradient-logging
    # hooks (writer path) and do not affect the forward value.

    loss = both_logic(logits_1, logits_2, logits_same, logits_sum9)
    jax.block_until_ready(loss)
    assert loss.shape == () and jnp.isfinite(loss)
    print("KERNEL_OK")
</pallas_src>

<mosaic_0001>
module attributes {stable_mosaic.version = 11 : i64} {
  func.func @_both_logic_kernel(%arg0: i32, %arg1: memref<10x4x4xf32, #tpu.memory_space<vmem>>, %arg2: memref<10x4x4xf32, #tpu.memory_space<vmem>>, %arg3: memref<4x4xf32, #tpu.memory_space<vmem>>, %arg4: memref<4x4xf32, #tpu.memory_space<vmem>>, %arg5: memref<4x4xf32, #tpu.memory_space<vmem>>, %arg6: memref<1x8x128xf32, #tpu.memory_space<vmem>>) attributes {dimension_semantics = [#tpu.dimension_semantics<parallel>], iteration_bounds = array<i64: 1>, scalar_prefetch = 0 : i64, scratch_operands = 0 : i64, tpu.core_type = #tpu.core_type<tc>, window_params = [{transform_indices = @transform_0, window_bounds = array<i64: 10, 4, 4>}, {transform_indices = @transform_1, window_bounds = array<i64: 10, 4, 4>}, {transform_indices = @transform_2, window_bounds = array<i64: 4, 4>}, {transform_indices = @transform_3, window_bounds = array<i64: 4, 4>}, {transform_indices = @transform_4, window_bounds = array<i64: 4, 4>}, {transform_indices = @transform_5, window_bounds = array<i64: 1, 8, 128>}]} {
    %c0 = arith.constant 0 : index
    %c0_0 = arith.constant 0 : index
    %c0_1 = arith.constant 0 : index
    %0 = vector.load %arg1[%c0, %c0_0, %c0_1] : memref<10x4x4xf32, #tpu.memory_space<vmem>>, vector<10x4x4xf32>
    %cst = arith.constant dense<0xFF800000> : vector<4x4xf32>
    %1 = vector.multi_reduction <maximumf>, %0, %cst [0] : vector<10x4x4xf32> to vector<4x4xf32>
    %2 = vector.shape_cast %1 : vector<4x4xf32> to vector<1x4x4xf32>
    %3 = vector.broadcast %2 : vector<1x4x4xf32> to vector<10x4x4xf32>
    %4 = arith.subf %0, %3 : vector<10x4x4xf32>
    %5 = math.exp %4 : vector<10x4x4xf32>
    %cst_2 = arith.constant dense<0.000000e+00> : vector<4x4xf32>
    %6 = vector.multi_reduction <add>, %5, %cst_2 [0] : vector<10x4x4xf32> to vector<4x4xf32>
    %7 = vector.shape_cast %6 : vector<4x4xf32> to vector<1x4x4xf32>
    %cst_3 = arith.constant 1.000000e+00 : f32
    %8 = vector.broadcast %cst_3 : f32 to vector<1x4x4xf32>
    %9 = arith.divf %8, %7 : vector<1x4x4xf32>
    %10 = vector.broadcast %9 : vector<1x4x4xf32> to vector<10x4x4xf32>
    %11 = arith.mulf %5, %10 : vector<10x4x4xf32>
    %c0_4 = arith.constant 0 : index
    %c0_5 = arith.constant 0 : index
    %c0_6 = arith.constant 0 : index
    %12 = vector.load %arg2[%c0_4, %c0_5, %c0_6] : memref<10x4x4xf32, #tpu.memory_space<vmem>>, vector<10x4x4xf32>
    %cst_7 = arith.constant dense<0xFF800000> : vector<4x4xf32>
    %13 = vector.multi_reduction <maximumf>, %12, %cst_7 [0] : vector<10x4x4xf32> to vector<4x4xf32>
    %14 = vector.shape_cast %13 : vector<4x4xf32> to vector<1x4x4xf32>
    %15 = vector.broadcast %14 : vector<1x4x4xf32> to vector<10x4x4xf32>
    %16 = arith.subf %12, %15 : vector<10x4x4xf32>
    %17 = math.exp %16 : vector<10x4x4xf32>
    %cst_8 = arith.constant dense<0.000000e+00> : vector<4x4xf32>
    %18 = vector.multi_reduction <add>, %17, %cst_8 [0] : vector<10x4x4xf32> to vector<4x4xf32>
    %19 = vector.shape_cast %18 : vector<4x4xf32> to vector<1x4x4xf32>
    %cst_9 = arith.constant 1.000000e+00 : f32
    %20 = vector.broadcast %cst_9 : f32 to vector<1x4x4xf32>
    %21 = arith.divf %20, %19 : vector<1x4x4xf32>
    %22 = vector.broadcast %21 : vector<1x4x4xf32> to vector<10x4x4xf32>
    %23 = arith.mulf %17, %22 : vector<10x4x4xf32>
    %c0_10 = arith.constant 0 : index
    %c0_11 = arith.constant 0 : index
    %24 = vector.load %arg3[%c0_10, %c0_11] : memref<4x4xf32, #tpu.memory_space<vmem>>, vector<4x4xf32>
    %25 = math.absf %24 : vector<4x4xf32>
    %cst_12 = arith.constant 0.000000e+00 : f32
    %26 = vector.broadcast %cst_12 : f32 to vector<4x4xf32>
    %27 = arith.subf %26, %25 : vector<4x4xf32>
    %28 = math.exp %27 : vector<4x4xf32>
    %cst_13 = arith.constant 1.000000e+00 : f32
    %29 = vector.broadcast %cst_13 : f32 to vector<4x4xf32>
    %30 = arith.addf %29, %28 : vector<4x4xf32>
    %cst_14 = arith.constant 1.000000e+00 : f32
    %31 = vector.broadcast %cst_14 : f32 to vector<4x4xf32>
    %32 = arith.divf %31, %30 : vector<4x4xf32>
    %cst_15 = arith.constant 0.000000e+00 : f32
    %33 = vector.broadcast %cst_15 : f32 to vector<4x4xf32>
    %34 = arith.cmpf oge, %24, %33 : vector<4x4xf32>
    %cst_16 = arith.constant 1.000000e+00 : f32
    %35 = vector.broadcast %cst_16 : f32 to vector<4x4xf32>
    %36 = arith.subf %35, %32 : vector<4x4xf32>
    %37 = arith.select %34, %32, %36 : vector<4x4xi1>, vector<4x4xf32>
    %c0_17 = arith.constant 0 : index
    %c0_18 = arith.constant 0 : index
    %38 = vector.load %arg4[%c0_17, %c0_18] : memref<4x4xf32, #tpu.memory_space<vmem>>, vector<4x4xf32>
    %39 = math.absf %38 : vector<4x4xf32>
    %cst_19 = arith.constant 0.000000e+00 : f32
    %40 = vector.broadcast %cst_19 : f32 to vector<4x4xf32>
    %41 = arith.subf %40, %39 : vector<4x4xf32>
    %42 = math.exp %41 : vector<4x4xf32>
    %cst_20 = arith.constant 1.000000e+00 : f32
    %43 = vector.broadcast %cst_20 : f32 to vector<4x4xf32>
    %44 = arith.addf %43, %42 : vector<4x4xf32>
    %cst_21 = arith.constant 1.000000e+00 : f32
    %45 = vector.broadcast %cst_21 : f32 to vector<4x4xf32>
    %46 = arith.divf %45, %44 : vector<4x4xf32>
    %cst_22 = arith.constant 0.000000e+00 : f32
    %47 = vector.broadcast %cst_22 : f32 to vector<4x4xf32>
    %48 = arith.cmpf oge, %38, %47 : vector<4x4xf32>
    %cst_23 = arith.constant 1.000000e+00 : f32
    %49 = vector.broadcast %cst_23 : f32 to vector<4x4xf32>
    %50 = arith.subf %49, %46 : vector<4x4xf32>
    %51 = arith.select %48, %46, %50 : vector<4x4xi1>, vector<4x4xf32>
    %c0_24 = arith.constant 0 : index
    %c0_25 = arith.constant 0 : index
    %52 = vector.load %arg5[%c0_24, %c0_25] : memref<4x4xf32, #tpu.memory_space<vmem>>, vector<4x4xf32>
    %53 = math.absf %52 : vector<4x4xf32>
    %cst_26 = arith.constant 0.000000e+00 : f32
    %54 = vector.broadcast %cst_26 : f32 to vector<4x4xf32>
    %55 = arith.subf %54, %53 : vector<4x4xf32>
    %56 = math.exp %55 : vector<4x4xf32>
    %cst_27 = arith.constant 1.000000e+00 : f32
    %57 = vector.broadcast %cst_27 : f32 to vector<4x4xf32>
    %58 = arith.addf %57, %56 : vector<4x4xf32>
    %cst_28 = arith.constant 1.000000e+00 : f32
    %59 = vector.broadcast %cst_28 : f32 to vector<4x4xf32>
    %60 = arith.divf %59, %58 : vector<4x4xf32>
    %cst_29 = arith.constant 0.000000e+00 : f32
    %61 = vector.broadcast %cst_29 : f32 to vector<4x4xf32>
    %62 = arith.cmpf oge, %52, %61 : vector<4x4xf32>
    %cst_30 = arith.constant 1.000000e+00 : f32
    %63 = vector.broadcast %cst_30 : f32 to vector<4x4xf32>
    %64 = arith.subf %63, %60 : vector<4x4xf32>
    %65 = arith.select %62, %60, %64 : vector<4x4xi1>, vector<4x4xf32>
    %66 = vector.shape_cast %37 : vector<4x4xf32> to vector<1x4x4xf32>
    %67 = arith.mulf %11, %23 : vector<10x4x4xf32>
    %cst_31 = arith.constant 1.000000e+00 : f32
    %68 = vector.broadcast %cst_31 : f32 to vector<10x4x4xf32>
    %69 = arith.subf %68, %67 : vector<10x4x4xf32>
    %70 = vector.broadcast %66 : vector<1x4x4xf32> to vector<10x4x4xf32>
    %71 = arith.mulf %67, %70 : vector<10x4x4xf32>
    %72 = arith.addf %69, %71 : vector<10x4x4xf32>
    %73 = vector.broadcast %66 : vector<1x4x4xf32> to vector<10x4x4xf32>
    %74 = arith.mulf %11, %73 : vector<10x4x4xf32>
    %cst_32 = arith.constant 1.000000e+00 : f32
    %75 = vector.broadcast %cst_32 : f32 to vector<10x4x4xf32>
    %76 = arith.subf %75, %74 : vector<10x4x4xf32>
    %77 = arith.mulf %74, %23 : vector<10x4x4xf32>
    %78 = arith.addf %76, %77 : vector<10x4x4xf32>
    %79 = arith.addf %72, %78 : vector<10x4x4xf32>
    %80 = vector.shape_cast %79 : vector<10x4x4xf32> to vector<1x10x4x4xf32>
    %cst_33 = arith.constant dense<0.000000e+00> : vector<1xf32>
    %81 = vector.multi_reduction <add>, %80, %cst_33 [1, 2, 3] : vector<1x10x4x4xf32> to vector<1xf32>
    %82 = vector.shape_cast %81 : vector<1xf32> to vector<1x1x1x1xf32>
    %83 = vector.extract %82[0, 0, 0, 0] : f32 from vector<1x1x1x1xf32>
    %cst_34 = arith.constant 1.000000e+00 : f32
    %84 = vector.broadcast %cst_34 : f32 to vector<4x4xf32>
    %85 = arith.subf %84, %37 : vector<4x4xf32>
    %86 = arith.mulf %37, %51 : vector<4x4xf32>
    %87 = arith.addf %85, %86 : vector<4x4xf32>
    %88 = vector.shape_cast %87 : vector<4x4xf32> to vector<1x4x4xf32>
    %cst_35 = arith.constant dense<0.000000e+00> : vector<1xf32>
    %89 = vector.multi_reduction <add>, %88, %cst_35 [1, 2] : vector<1x4x4xf32> to vector<1xf32>
    %90 = vector.shape_cast %89 : vector<1xf32> to vector<1x1x1xf32>
    %91 = vector.extract %90[0, 0, 0] : f32 from vector<1x1x1xf32>
    %cst_36 = arith.constant dense<0xFF800000> : vector<4xf32>
    %92 = vector.multi_reduction <maximumf>, %65, %cst_36 [1] : vector<4x4xf32> to vector<4xf32>
    %93 = vector.shape_cast %92 : vector<4xf32> to vector<4x1xf32>
    %94 = vector.shape_cast %93 : vector<4x1xf32> to vector<1x4x1xf32>
    %cst_37 = arith.constant dense<0.000000e+00> : vector<1xf32>
    %95 = vector.multi_reduction <add>, %94, %cst_37 [1, 2] : vector<1x4x1xf32> to vector<1xf32>
    %96 = vector.shape_cast %95 : vector<1xf32> to vector<1x1x1xf32>
    %97 = vector.extract %96[0, 0, 0] : f32 from vector<1x1x1xf32>
    %cst_38 = arith.constant 0.000000e+00 : f32
    %98 = vector.broadcast %cst_38 : f32 to vector<4x4xf32>
    %99 = vector.extract_strided_slice %11 {offsets = [0, 0, 0], sizes = [1, 4, 4], strides = [1, 1, 1]} : vector<10x4x4xf32> to vector<1x4x4xf32>
    %100 = vector.shape_cast %99 : vector<1x4x4xf32> to vector<4x4xf32>
    %101 = vector.extract_strided_slice %23 {offsets = [9, 0, 0], sizes = [1, 4, 4], strides = [1, 1, 1]} : vector<10x4x4xf32> to vector<1x4x4xf32>
    %102 = vector.shape_cast %101 : vector<1x4x4xf32> to vector<4x4xf32>
    %103 = arith.mulf %100, %102 : vector<4x4xf32>
    %104 = arith.addf %98, %103 : vector<4x4xf32>
    %105 = arith.mulf %98, %103 : vector<4x4xf32>
    %106 = arith.subf %104, %105 : vector<4x4xf32>
    %107 = vector.extract_strided_slice %11 {offsets = [1, 0, 0], sizes = [1, 4, 4], strides = [1, 1, 1]} : vector<10x4x4xf32> to vector<1x4x4xf32>
    %108 = vector.shape_cast %107 : vector<1x4x4xf32> to vector<4x4xf32>
    %109 = vector.extract_strided_slice %23 {offsets = [8, 0, 0], sizes = [1, 4, 4], strides = [1, 1, 1]} : vector<10x4x4xf32> to vector<1x4x4xf32>
    %110 = vector.shape_cast %109 : vector<1x4x4xf32> to vector<4x4xf32>
    %111 = arith.mulf %108, %110 : vector<4x4xf32>
    %112 = arith.addf %106, %111 : vector<4x4xf32>
    %113 = arith.mulf %106, %111 : vector<4x4xf32>
    %114 = arith.subf %112, %113 : vector<4x4xf32>
    %115 = vector.extract_strided_slice %11 {offsets = [2, 0, 0], sizes = [1, 4, 4], strides = [1, 1, 1]} : vector<10x4x4xf32> to vector<1x4x4xf32>
    %116 = vector.shape_cast %115 : vector<1x4x4xf32> to vector<4x4xf32>
    %117 = vector.extract_strided_slice %23 {offsets = [7, 0, 0], sizes = [1, 4, 4], strides = [1, 1, 1]} : vector<10x4x4xf32> to vector<1x4x4xf32>
    %118 = vector.shape_cast %117 : vector<1x4x4xf32> to vector<4x4xf32>
    %119 = arith.mulf %116, %118 : vector<4x4xf32>
    %120 = arith.addf %114, %119 : vector<4x4xf32>
    %121 = arith.mulf %114, %119 : vector<4x4xf32>
    %122 = arith.subf %120, %121 : vector<4x4xf32>
    %123 = vector.extract_strided_slice %11 {offsets = [3, 0, 0], sizes = [1, 4, 4], strides = [1, 1, 1]} : vector<10x4x4xf32> to vector<1x4x4xf32>
    %124 = vector.shape_cast %123 : vector<1x4x4xf32> to vector<4x4xf32>
    %125 = vector.extract_strided_slice %23 {offsets = [6, 0, 0], sizes = [1, 4, 4], strides = [1, 1, 1]} : vector<10x4x4xf32> to vector<1x4x4xf32>
    %126 = vector.shape_cast %125 : vector<1x4x4xf32> to vector<4x4xf32>
    %127 = arith.mulf %124, %126 : vector<4x4xf32>
    %128 = arith.addf %122, %127 : vector<4x4xf32>
    %129 = arith.mulf %122, %127 : vector<4x4xf32>
    %130 = arith.subf %128, %129 : vector<4x4xf32>
    %131 = vector.extract_strided_slice %11 {offsets = [4, 0, 0], sizes = [1, 4, 4], strides = [1, 1, 1]} : vector<10x4x4xf32> to vector<1x4x4xf32>
    %132 = vector.shape_cast %131 : vector<1x4x4xf32> to vector<4x4xf32>
    %133 = vector.extract_strided_slice %23 {offsets = [5, 0, 0], sizes = [1, 4, 4], strides = [1, 1, 1]} : vector<10x4x4xf32> to vector<1x4x4xf32>
    %134 = vector.shape_cast %133 : vector<1x4x4xf32> to vector<4x4xf32>
    %135 = arith.mulf %132, %134 : vector<4x4xf32>
    %136 = arith.addf %130, %135 : vector<4x4xf32>
    %137 = arith.mulf %130, %135 : vector<4x4xf32>
    %138 = arith.subf %136, %137 : vector<4x4xf32>
    %139 = vector.extract_strided_slice %11 {offsets = [5, 0, 0], sizes = [1, 4, 4], strides = [1, 1, 1]} : vector<10x4x4xf32> to vector<1x4x4xf32>
    %140 = vector.shape_cast %139 : vector<1x4x4xf32> to vector<4x4xf32>
    %141 = vector.extract_strided_slice %23 {offsets = [4, 0, 0], sizes = [1, 4, 4], strides = [1, 1, 1]} : vector<10x4x4xf32> to vector<1x4x4xf32>
    %142 = vector.shape_cast %141 : vector<1x4x4xf32> to vector<4x4xf32>
    %143 = arith.mulf %140, %142 : vector<4x4xf32>
    %144 = arith.addf %138, %143 : vector<4x4xf32>
    %145 = arith.mulf %138, %143 : vector<4x4xf32>
    %146 = arith.subf %144, %145 : vector<4x4xf32>
    %147 = vector.extract_strided_slice %11 {offsets = [6, 0, 0], sizes = [1, 4, 4], strides = [1, 1, 1]} : vector<10x4x4xf32> to vector<1x4x4xf32>
    %148 = vector.shape_cast %147 : vector<1x4x4xf32> to vector<4x4xf32>
    %149 = vector.extract_strided_slice %23 {offsets = [3, 0, 0], sizes = [1, 4, 4], strides = [1, 1, 1]} : vector<10x4x4xf32> to vector<1x4x4xf32>
    %150 = vector.shape_cast %149 : vector<1x4x4xf32> to vector<4x4xf32>
    %151 = arith.mulf %148, %150 : vector<4x4xf32>
    %152 = arith.addf %146, %151 : vector<4x4xf32>
    %153 = arith.mulf %146, %151 : vector<4x4xf32>
    %154 = arith.subf %152, %153 : vector<4x4xf32>
    %155 = vector.extract_strided_slice %11 {offsets = [7, 0, 0], sizes = [1, 4, 4], strides = [1, 1, 1]} : vector<10x4x4xf32> to vector<1x4x4xf32>
    %156 = vector.shape_cast %155 : vector<1x4x4xf32> to vector<4x4xf32>
    %157 = vector.extract_strided_slice %23 {offsets = [2, 0, 0], sizes = [1, 4, 4], strides = [1, 1, 1]} : vector<10x4x4xf32> to vector<1x4x4xf32>
    %158 = vector.shape_cast %157 : vector<1x4x4xf32> to vector<4x4xf32>
    %159 = arith.mulf %156, %158 : vector<4x4xf32>
    %160 = arith.addf %154, %159 : vector<4x4xf32>
    %161 = arith.mulf %154, %159 : vector<4x4xf32>
    %162 = arith.subf %160, %161 : vector<4x4xf32>
    %163 = vector.extract_strided_slice %11 {offsets = [8, 0, 0], sizes = [1, 4, 4], strides = [1, 1, 1]} : vector<10x4x4xf32> to vector<1x4x4xf32>
    %164 = vector.shape_cast %163 : vector<1x4x4xf32> to vector<4x4xf32>
    %165 = vector.extract_strided_slice %23 {offsets = [1, 0, 0], sizes = [1, 4, 4], strides = [1, 1, 1]} : vector<10x4x4xf32> to vector<1x4x4xf32>
    %166 = vector.shape_cast %165 : vector<1x4x4xf32> to vector<4x4xf32>
    %167 = arith.mulf %164, %166 : vector<4x4xf32>
    %168 = arith.addf %162, %167 : vector<4x4xf32>
    %169 = arith.mulf %162, %167 : vector<4x4xf32>
    %170 = arith.subf %168, %169 : vector<4x4xf32>
    %171 = vector.extract_strided_slice %11 {offsets = [9, 0, 0], sizes = [1, 4, 4], strides = [1, 1, 1]} : vector<10x4x4xf32> to vector<1x4x4xf32>
    %172 = vector.shape_cast %171 : vector<1x4x4xf32> to vector<4x4xf32>
    %173 = vector.extract_strided_slice %23 {offsets = [0, 0, 0], sizes = [1, 4, 4], strides = [1, 1, 1]} : vector<10x4x4xf32> to vector<1x4x4xf32>
    %174 = vector.shape_cast %173 : vector<1x4x4xf32> to vector<4x4xf32>
    %175 = arith.mulf %172, %174 : vector<4x4xf32>
    %176 = arith.addf %170, %175 : vector<4x4xf32>
    %177 = arith.mulf %170, %175 : vector<4x4xf32>
    %178 = arith.subf %176, %177 : vector<4x4xf32>
    %cst_39 = arith.constant 1.000000e+00 : f32
    %179 = vector.broadcast %cst_39 : f32 to vector<4x4xf32>
    %180 = arith.subf %179, %65 : vector<4x4xf32>
    %181 = arith.mulf %65, %178 : vector<4x4xf32>
    %182 = arith.addf %180, %181 : vector<4x4xf32>
    %183 = vector.shape_cast %182 : vector<4x4xf32> to vector<1x4x4xf32>
    %cst_40 = arith.constant dense<0.000000e+00> : vector<1xf32>
    %184 = vector.multi_reduction <add>, %183, %cst_40 [1, 2] : vector<1x4x4xf32> to vector<1xf32>
    %185 = vector.shape_cast %184 : vector<1xf32> to vector<1x1x1xf32>
    %186 = vector.extract %185[0, 0, 0] : f32 from vector<1x1x1xf32>
    %187 = tpu.iota {dimensions = array<i32: 1>} : vector<1x8x128xi32>
    %188 = tpu.iota {dimensions = array<i32: 2>} : vector<1x8x128xi32>
    %c128_i32 = arith.constant 128 : i32
    %189 = vector.broadcast %c128_i32 : i32 to vector<1x8x128xi32>
    %190 = arith.muli %187, %189 : vector<1x8x128xi32>
    %191 = arith.addi %190, %188 : vector<1x8x128xi32>
    %c0_i32 = arith.constant 0 : i32
    %192 = vector.broadcast %c0_i32 : i32 to vector<1x8x128xi32>
    %193 = arith.cmpi eq, %191, %192 : vector<1x8x128xi32>
    %c1_i32 = arith.constant 1 : i32
    %194 = vector.broadcast %c1_i32 : i32 to vector<1x8x128xi32>
    %195 = arith.cmpi eq, %191, %194 : vector<1x8x128xi32>
    %c2_i32 = arith.constant 2 : i32
    %196 = vector.broadcast %c2_i32 : i32 to vector<1x8x128xi32>
    %197 = arith.cmpi eq, %191, %196 : vector<1x8x128xi32>
    %c3_i32 = arith.constant 3 : i32
    %198 = vector.broadcast %c3_i32 : i32 to vector<1x8x128xi32>
    %199 = arith.cmpi eq, %191, %198 : vector<1x8x128xi32>
    %cst_41 = arith.constant 0.000000e+00 : f32
    %200 = vector.broadcast %186 : f32 to vector<1x8x128xf32>
    %201 = vector.broadcast %cst_41 : f32 to vector<1x8x128xf32>
    %202 = arith.select %199, %200, %201 : vector<1x8x128xi1>, vector<1x8x128xf32>
    %203 = vector.broadcast %97 : f32 to vector<1x8x128xf32>
    %204 = arith.select %197, %203, %202 : vector<1x8x128xi1>, vector<1x8x128xf32>
    %205 = vector.broadcast %91 : f32 to vector<1x8x128xf32>
    %206 = arith.select %195, %205, %204 : vector<1x8x128xi1>, vector<1x8x128xf32>
    %207 = vector.broadcast %83 : f32 to vector<1x8x128xf32>
    %208 = arith.select %193, %207, %206 : vector<1x8x128xi1>, vector<1x8x128xf32>
    %c0_42 = arith.constant 0 : index
    %c0_43 = arith.constant 0 : index
    %c0_44 = arith.constant 0 : index
    %209 = vector.load %arg6[%c0_42, %c0_43, %c0_44] : memref<1x8x128xf32, #tpu.memory_space<vmem>>, vector<1x8x128xf32>
    tpu.vector_store %arg6[%c0_42, %c0_43, %c0_44], %208 {strides = array<i32>} : memref<1x8x128xf32, #tpu.memory_space<vmem>>, vector<1x8x128xf32>,
    return
  }
  func.func @transform_0(%arg0: i32) -> (i32, i32, i32) {
    %c0_i32 = arith.constant 0 : i32
    %c0_i32_0 = arith.constant 0 : i32
    %c0_i32_1 = arith.constant 0 : i32
    return %c0_i32, %arg0, %c0_i32_0 : i32, i32, i32
  }
  func.func @transform_1(%arg0: i32) -> (i32, i32, i32) {
    %c0_i32 = arith.constant 0 : i32
    %c0_i32_0 = arith.constant 0 : i32
    %c0_i32_1 = arith.constant 0 : i32
    return %c0_i32, %arg0, %c0_i32_0 : i32, i32, i32
  }
  func.func @transform_2(%arg0: i32) -> (i32, i32) {
    %c0_i32 = arith.constant 0 : i32
    %c0_i32_0 = arith.constant 0 : i32
    return %arg0, %c0_i32 : i32, i32
  }
  func.func @transform_3(%arg0: i32) -> (i32, i32) {
    %c0_i32 = arith.constant 0 : i32
    %c0_i32_0 = arith.constant 0 : i32
    return %arg0, %c0_i32 : i32, i32
  }
  func.func @transform_4(%arg0: i32) -> (i32, i32) {
    %c0_i32 = arith.constant 0 : i32
    %c0_i32_0 = arith.constant 0 : i32
    return %arg0, %c0_i32 : i32, i32
  }
  func.func @transform_5(%arg0: i32) -> (i32, i32, i32) {
    %c0_i32 = arith.constant 0 : i32
    %c0_i32_0 = arith.constant 0 : i32
    %c0_i32_1 = arith.constant 0 : i32
    return %arg0, %c0_i32, %c0_i32_0 : i32, i32, i32
  }
}

</mosaic_0001>

<llo_original>
// kernel: tpu_custom_call.1
$region0: #{tpu_custom_call.1}
  #allocation0 [shape = 'u32[]', space=smem, size = 0x4, offset = 0x4, fixed_abs, tag = 'smem constant byte address 0x4 - core index']
  #allocation1 [shape = 'u32[144,128]{1,0:T(1,128)}', space=vmem, size = 0x12000, scoped, tag = 'internal scratch']
  %s0 = inlined_call_operand.vmem [shape: f32[10,4,4], index: 0, kind: input, shape index: {}]
  %s1 = inlined_call_operand.vmem [shape: f32[10,4,4], index: 1, kind: input, shape index: {}]
  %s2 = inlined_call_operand.vmem [shape: f32[4,4], index: 2, kind: input, shape index: {}]
  %s3 = inlined_call_operand.vmem [shape: f32[4,4], index: 3, kind: input, shape index: {}]
  %s4 = inlined_call_operand.vmem [shape: f32[4,4], index: 4, kind: input, shape index: {}]
  %s5 = inlined_call_operand.hbm [shape: f32[1,8,128], index: 5, kind: output, shape index: {}]
  %s6 = sld [smem:[#allocation0]]
  $region30: #{tpu_custom_call.1} parent=0
    _
  %s8 = ssub.s32 1, %s6
  %s9 = scalar_select 0, %s8, %s6
  $region1: #{tpu_custom_call.1} parent=0
    #allocation2 [shape = 'u8[4096]{0}', space=vmem, size = 0x1000, scoped, tag = 'output window, operand 0, single buffered']
    #allocation3 [shape = 's32[1]{0}', space=sflag, size = 0x4, scoped, tag = 'scoped memory for tpu_custom_call.1']
    %10 = vsyncpa [#allocation3], 0
    // Predicated region
    $region2: #{tpu_custom_call.1} parent=1 // pred_check
      _
    $region3: #{tpu_custom_call.1} parent=1 // pred_check_branch
      %12 = sbr.rel (0) target = $region5
    $region4: #{tpu_custom_call.1} parent=1 // pred_region
      _
    $region5: #{tpu_custom_call.1} parent=1 // pred_fallthru
      _
    // Predicated region
    $region6: #{tpu_custom_call.1} parent=1 // pred_check
      _
    $region7: #{tpu_custom_call.1} parent=1 // pred_check_branch
      %14 = sbr.rel (0) target = $region9
    $region8: #{tpu_custom_call.1} parent=1 // pred_region
      _
    $region9: #{tpu_custom_call.1} parent=1 // pred_fallthru
      _
    // Predicated region
    $region10: #{tpu_custom_call.1} parent=1 // pred_check
      _
    $region11: #{tpu_custom_call.1} parent=1 // pred_check_branch
      %16 = sbr.rel (0) target = $region13
    $region12: #{tpu_custom_call.1} parent=1 // pred_region
      _
    $region13: #{tpu_custom_call.1} parent=1 // pred_fallthru
      _
    // Predicated region
    $region14: #{tpu_custom_call.1} parent=1 // pred_check
      _
    $region15: #{tpu_custom_call.1} parent=1 // pred_check_branch
      %18 = sbr.rel (0) target = $region17
    $region16: #{tpu_custom_call.1} parent=1 // pred_region
      _
    $region17: #{tpu_custom_call.1} parent=1 // pred_fallthru
      _
    // Predicated region
    $region18: #{tpu_custom_call.1} parent=1 // pred_check
      _
    $region19: #{tpu_custom_call.1} parent=1 // pred_check_branch
      %20 = sbr.rel (0) target = $region21
    $region20: #{tpu_custom_call.1} parent=1 // pred_region
      _
    $region21: #{tpu_custom_call.1} parent=1 // pred_fallthru
      _
    %v21 = vld [vmem:[%s0] sm:$0xf]
    %v22 = vld [vmem:[%s0 + $0x4] sm:$0xf]
    %v23 = vld [vmem:[%s0 + $0x8] sm:$0xf]
    %v24 = vld [vmem:[%s0 + $0xc] sm:$0xf]
    %v25 = vld [vmem:[%s0 + $0x10] sm:$0xf]
    %v26 = vld [vmem:[%s0 + $0x14] sm:$0xf]
    %v27 = vld [vmem:[%s0 + $0x18] sm:$0xf]
    %v28 = vld [vmem:[%s0 + $0x1c] sm:$0xf]
    %v29 = vld [vmem:[%s0 + $0x20] sm:$0xf]
    %v30 = vld [vmem:[%s0 + $0x24] sm:$0xf]
    %vm31 = vcmask 27648
    %v32 = vsel %vm31, %v21, -inf
    %v33 = vsel %vm31, %v22, -inf
    %v34 = vsel %vm31, %v23, -inf
    %v35 = vsel %vm31, %v24, -inf
    %v36 = vsel %vm31, %v25, -inf
    %v37 = vmax.f32 %v32, %v36
    %v38 = vsel %vm31, %v26, -inf
    %v39 = vmax.f32 %v33, %v38
    %v40 = vsel %vm31, %v27, -inf
    %v41 = vmax.f32 %v34, %v40
    %v42 = vsel %vm31, %v28, -inf
    %v43 = vmax.f32 %v35, %v42
    %v44 = vsel %vm31, %v29, -inf
    %v45 = vmax.f32 %v37, %v44
    %v46 = vsel %vm31, %v30, -inf
    %v47 = vmax.f32 %v39, %v46
    %v48 = vmax.f32 %v45, %v47
    %v49 = vmax.f32 %v41, %v43
    %v50 = vmax.f32 %v48, %v49
    %v51 = vsub.f32 %v21, %v50
    %v52 = vsub.f32 %v22, %v50
    %v53 = vsub.f32 %v23, %v50
    %v54 = vsub.f32 %v24, %v50
    %v55 = vsub.f32 %v25, %v50
    %v56 = vsub.f32 %v26, %v50
    %v57 = vsub.f32 %v27, %v50
    %v58 = vsub.f32 %v28, %v50
    %v59 = vsub.f32 %v29, %v50
    %v60 = vsub.f32 %v30, %v50
    %v61 = vmul.f32 %v51, 1.442695
    %v62 = vpow.pop %v61
    %v63 = vmul.f32 %v52, 1.442695
    %v64 = vpow.pop %v63
    %v65 = vmul.f32 %v53, 1.442695
    %v66 = vpow.pop %v65
    %v67 = vmul.f32 %v54, 1.442695
    %v68 = vpow.pop %v67
    %v69 = vmul.f32 %v55, 1.442695
    %v70 = vpow.pop %v69
    %v71 = vmul.f32 %v56, 1.442695
    %v72 = vpow.pop %v71
    %v73 = vmul.f32 %v57, 1.442695
    %v74 = vpow.pop %v73
    %v75 = vmul.f32 %v58, 1.442695
    %v76 = vpow.pop %v75
    %v77 = vmul.f32 %v59, 1.442695
    %v78 = vpow.pop %v77
    %v79 = vmul.f32 %v60, 1.442695
    %v80 = vpow.pop %v79
    %v81 = vsel %vm31, %v62, 0.0
    %v82 = vsel %vm31, %v64, 0.0
    %v83 = vadd.f32 %v81, %v82
    %v84 = vsel %vm31, %v66, 0.0
    %v85 = vadd.f32 %v83, %v84
    %v86 = vsel %vm31, %v68, 0.0
    %v87 = vadd.f32 %v85, %v86
    %v88 = vsel %vm31, %v70, 0.0
    %v89 = vadd.f32 %v87, %v88
    %v90 = vsel %vm31, %v72, 0.0
    %v91 = vadd.f32 %v89, %v90
    %v92 = vsel %vm31, %v74, 0.0
    %v93 = vadd.f32 %v91, %v92
    %v94 = vsel %vm31, %v76, 0.0
    %v95 = vadd.f32 %v93, %v94
    %v96 = vsel %vm31, %v78, 0.0
    %v97 = vadd.f32 %v95, %v96
    %v98 = vsel %vm31, %v80, 0.0
    %v99 = vadd.f32 %v97, %v98
    %v100 = vrcp.pop %v99
    %v101 = vmul.f32 1.0, %v100
    %v102 = vmul.f32 %v62, %v101
    %v103 = vmul.f32 %v64, %v101
    %v104 = vmul.f32 %v66, %v101
    %v105 = vmul.f32 %v68, %v101
    %v106 = vmul.f32 %v70, %v101
    %v107 = vmul.f32 %v72, %v101
    %v108 = vmul.f32 %v74, %v101
    %v109 = vmul.f32 %v76, %v101
    %v110 = vmul.f32 %v78, %v101
    %v111 = vmul.f32 %v80, %v101
    %v112 = vld [vmem:[%s1] sm:$0xf]
    %v113 = vld [vmem:[%s1 + $0x4] sm:$0xf]
    %v114 = vld [vmem:[%s1 + $0x8] sm:$0xf]
    %v115 = vld [vmem:[%s1 + $0xc] sm:$0xf]
    %v116 = vld [vmem:[%s1 + $0x10] sm:$0xf]
    %v117 = vld [vmem:[%s1 + $0x14] sm:$0xf]
    %v118 = vld [vmem:[%s1 + $0x18] sm:$0xf]
    %v119 = vld [vmem:[%s1 + $0x1c] sm:$0xf]
    %v120 = vld [vmem:[%s1 + $0x20] sm:$0xf]
    %v121 = vld [vmem:[%s1 + $0x24] sm:$0xf]
    %v122 = vsel %vm31, %v112, -inf
    %v123 = vsel %vm31, %v113, -inf
    %v124 = vsel %vm31, %v114, -inf
    %v125 = vsel %vm31, %v115, -inf
    %v126 = vsel %vm31, %v116, -inf
    %v127 = vmax.f32 %v122, %v126
    %v128 = vsel %vm31, %v117, -inf
    %v129 = vmax.f32 %v123, %v128
    %v130 = vsel %vm31, %v118, -inf
    %v131 = vmax.f32 %v124, %v130
    %v132 = vsel %vm31, %v119, -inf
    %v133 = vmax.f32 %v125, %v132
    %v134 = vsel %vm31, %v120, -inf
    %v135 = vmax.f32 %v127, %v134
    %v136 = vsel %vm31, %v121, -inf
    %v137 = vmax.f32 %v129, %v136
    %v138 = vmax.f32 %v135, %v137
    %v139 = vmax.f32 %v131, %v133
    %v140 = vmax.f32 %v138, %v139
    %v141 = vsub.f32 %v112, %v140
    %v142 = vsub.f32 %v113, %v140
    %v143 = vsub.f32 %v114, %v140
    %v144 = vsub.f32 %v115, %v140
    %v145 = vsub.f32 %v116, %v140
    %v146 = vsub.f32 %v117, %v140
    %v147 = vsub.f32 %v118, %v140
    %v148 = vsub.f32 %v119, %v140
    %v149 = vsub.f32 %v120, %v140
    %v150 = vsub.f32 %v121, %v140
    %v151 = vmul.f32 %v141, 1.442695
    %v152 = vpow.pop %v151
    %v153 = vmul.f32 %v142, 1.442695
    %v154 = vpow.pop %v153
    %v155 = vmul.f32 %v143, 1.442695
    %v156 = vpow.pop %v155
    %v157 = vmul.f32 %v144, 1.442695
    %v158 = vpow.pop %v157
    %v159 = vmul.f32 %v145, 1.442695
    %v160 = vpow.pop %v159
    %v161 = vmul.f32 %v146, 1.442695
    %v162 = vpow.pop %v161
    %v163 = vmul.f32 %v147, 1.442695
    %v164 = vpow.pop %v163
    %v165 = vmul.f32 %v148, 1.442695
    %v166 = vpow.pop %v165
    %v167 = vmul.f32 %v149, 1.442695
    %v168 = vpow.pop %v167
    %v169 = vmul.f32 %v150, 1.442695
    %v170 = vpow.pop %v169
    %v171 = vsel %vm31, %v152, 0.0
    %v172 = vsel %vm31, %v154, 0.0
    %v173 = vadd.f32 %v171, %v172
    %v174 = vsel %vm31, %v156, 0.0
    %v175 = vadd.f32 %v173, %v174
    %v176 = vsel %vm31, %v158, 0.0
    %v177 = vadd.f32 %v175, %v176
    %v178 = vsel %vm31, %v160, 0.0
    %v179 = vadd.f32 %v177, %v178
    %v180 = vsel %vm31, %v162, 0.0
    %v181 = vadd.f32 %v179, %v180
    %v182 = vsel %vm31, %v164, 0.0
    %v183 = vadd.f32 %v181, %v182
    %v184 = vsel %vm31, %v166, 0.0
    %v185 = vadd.f32 %v183, %v184
    %v186 = vsel %vm31, %v168, 0.0
    %v187 = vadd.f32 %v185, %v186
    %v188 = vsel %vm31, %v170, 0.0
    %v189 = vadd.f32 %v187, %v188
    %v190 = vrcp.pop %v189
    %v191 = vmul.f32 1.0, %v190
    %v192 = vmul.f32 %v152, %v191
    %v193 = vmul.f32 %v154, %v191
    %v194 = vmul.f32 %v156, %v191
    %v195 = vmul.f32 %v158, %v191
    %v196 = vmul.f32 %v160, %v191
    %v197 = vmul.f32 %v162, %v191
    %v198 = vmul.f32 %v164, %v191
    %v199 = vmul.f32 %v166, %v191
    %v200 = vmul.f32 %v168, %v191
    %v201 = vmul.f32 %v170, %v191
    %v202 = vld [vmem:[%s2] sm:$0xf]
    %v203 = vand.u32 2147483647, %v202
    %v204 = vsub.f32 0.0, %v203
    %v205 = vmul.f32 %v204, 1.442695
    %v206 = vpow.pop %v205
    %v207 = vadd.f32 %v206, 1.0
    %v208 = vrcp.pop %v207
    %v209 = vmul.f32 1.0, %v208
    %vm210 = vcmp.ge.f32.partialorder %v202, 0.0
    %v211 = vsub.f32 1.0, %v209
    %v212 = vsel %vm210, %v209, %v211
    %v213 = vld [vmem:[%s3] sm:$0xf]
    %v214 = vand.u32 2147483647, %v213
    %v215 = vsub.f32 0.0, %v214
    %v216 = vmul.f32 %v215, 1.442695
    %v217 = vpow.pop %v216
    %v218 = vadd.f32 %v217, 1.0
    %v219 = vrcp.pop %v218
    %v220 = vmul.f32 1.0, %v219
    %vm221 = vcmp.ge.f32.partialorder %v213, 0.0
    %v222 = vsub.f32 1.0, %v220
    %v223 = vsel %vm221, %v220, %v222
    %v224 = vld [vmem:[%s4] sm:$0xf]
    %v225 = vand.u32 2147483647, %v224
    %v226 = vsub.f32 0.0, %v225
    %v227 = vmul.f32 %v226, 1.442695
    %v228 = vpow.pop %v227
    %v229 = vadd.f32 %v228, 1.0
    %v230 = vrcp.pop %v229
    %v231 = vmul.f32 1.0, %v230
    %vm232 = vcmp.ge.f32.partialorder %v224, 0.0
    %v233 = vsub.f32 1.0, %v231
    %v234 = vsel %vm232, %v231, %v233
    %v235 = vmul.f32 %v102, %v192
    %v236 = vmul.f32 %v103, %v193
    %v237 = vmul.f32 %v104, %v194
    %v238 = vmul.f32 %v105, %v195
    %v239 = vmul.f32 %v106, %v196
    %v240 = vmul.f32 %v107, %v197
    %v241 = vmul.f32 %v108, %v198
    %v242 = vmul.f32 %v109, %v199
    %v243 = vmul.f32 %v110, %v200
    %v244 = vmul.f32 %v111, %v201
    %v245 = vsub.f32 1.0, %v235
    %v246 = vsub.f32 1.0, %v236
    %v247 = vsub.f32 1.0, %v237
    %v248 = vsub.f32 1.0, %v238
    %v249 = vsub.f32 1.0, %v239
    %v250 = vsub.f32 1.0, %v240
    %v251 = vsub.f32 1.0, %v241
    %v252 = vsub.f32 1.0, %v242
    %v253 = vsub.f32 1.0, %v243
    %v254 = vsub.f32 1.0, %v244
    %v255 = vmul.f32 %v235, %v212
    %v256 = vmul.f32 %v236, %v212
    %v257 = vmul.f32 %v237, %v212
    %v258 = vmul.f32 %v238, %v212
    %v259 = vmul.f32 %v239, %v212
    %v260 = vmul.f32 %v240, %v212
    %v261 = vmul.f32 %v241, %v212
    %v262 = vmul.f32 %v242, %v212
    %v263 = vmul.f32 %v243, %v212
    %v264 = vmul.f32 %v244, %v212
    %v265 = vadd.f32 %v245, %v255
    %v266 = vadd.f32 %v246, %v256
    %v267 = vadd.f32 %v247, %v257
    %v268 = vadd.f32 %v248, %v258
    %v269 = vadd.f32 %v249, %v259
    %v270 = vadd.f32 %v250, %v260
    %v271 = vadd.f32 %v251, %v261
    %v272 = vadd.f32 %v252, %v262
    %v273 = vadd.f32 %v253, %v263
    %v274 = vadd.f32 %v254, %v264
    %v275 = vmul.f32 %v102, %v212
    %v276 = vmul.f32 %v103, %v212
    %v277 = vmul.f32 %v104, %v212
    %v278 = vmul.f32 %v105, %v212
    %v279 = vmul.f32 %v106, %v212
    %v280 = vmul.f32 %v107, %v212
    %v281 = vmul.f32 %v108, %v212
    %v282 = vmul.f32 %v109, %v212
    %v283 = vmul.f32 %v110, %v212
    %v284 = vmul.f32 %v111, %v212
    %v285 = vsub.f32 1.0, %v275
    %v286 = vsub.f32 1.0, %v276
    %v287 = vsub.f32 1.0, %v277
    %v288 = vsub.f32 1.0, %v278
    %v289 = vsub.f32 1.0, %v279
    %v290 = vsub.f32 1.0, %v280
    %v291 = vsub.f32 1.0, %v281
    %v292 = vsub.f32 1.0, %v282
    %v293 = vsub.f32 1.0, %v283
    %v294 = vsub.f32 1.0, %v284
    %v295 = vmul.f32 %v275, %v192
    %v296 = vmul.f32 %v276, %v193
    %v297 = vmul.f32 %v277, %v194
    %v298 = vmul.f32 %v278, %v195
    %v299 = vmul.f32 %v279, %v196
    %v300 = vmul.f32 %v280, %v197
    %v301 = vmul.f32 %v281, %v198
    %v302 = vmul.f32 %v282, %v199
    %v303 = vmul.f32 %v283, %v200
    %v304 = vmul.f32 %v284, %v201
    %v305 = vadd.f32 %v285, %v295
    %v306 = vadd.f32 %v286, %v296
    %v307 = vadd.f32 %v287, %v297
    %v308 = vadd.f32 %v288, %v298
    %v309 = vadd.f32 %v289, %v299
    %v310 = vadd.f32 %v290, %v300
    %v311 = vadd.f32 %v291, %v301
    %v312 = vadd.f32 %v292, %v302
    %v313 = vadd.f32 %v293, %v303
    %v314 = vadd.f32 %v294, %v304
    %v315 = vadd.f32 %v265, %v305
    %v316 = vadd.f32 %v266, %v306
    %v317 = vadd.f32 %v267, %v307
    %v318 = vadd.f32 %v268, %v308
    %v319 = vadd.f32 %v269, %v309
    %v320 = vadd.f32 %v270, %v310
    %v321 = vadd.f32 %v271, %v311
    %v322 = vadd.f32 %v272, %v312
    %v323 = vadd.f32 %v273, %v313
    %v324 = vadd.f32 %v274, %v314
    %v325 = vsel %vm31, %v315, 0.0
    %v326 = vsel %vm31, %v316, 0.0
    %v327 = vadd.f32 %v325, %v326
    %v328 = vsel %vm31, %v317, 0.0
    %v329 = vadd.f32 %v327, %v328
    %v330 = vsel %vm31, %v318, 0.0
    %v331 = vadd.f32 %v329, %v330
    %v332 = vsel %vm31, %v319, 0.0
    %v333 = vadd.f32 %v331, %v332
    %v334 = vsel %vm31, %v320, 0.0
    %v335 = vadd.f32 %v333, %v334
    %v336 = vsel %vm31, %v321, 0.0
    %v337 = vadd.f32 %v335, %v336
    %v338 = vsel %vm31, %v322, 0.0
    %v339 = vadd.f32 %v337, %v338
    %v340 = vsel %vm31, %v323, 0.0
    %v341 = vadd.f32 %v339, %v340
    %v342 = vsel %vm31, %v324, 0.0
    %v343 = vadd.f32 %v341, %v342
    %344 = vadd.xlane.f32.xlu0 %v343
    %v345 = vpop.xlane.xlu0 %344
    %v346 = vrot.slane %v345, 4
    %v347 = vadd.f32 %v345, %v346
    %v348 = vrot.slane %v347, 2
    %v349 = vadd.f32 %v347, %v348
    %v350 = vrot.slane %v349, 1
    %v351 = vadd.f32 %v349, %v350
    %s352 = vtos %v351
    %v353 = vsub.f32 1.0, %v212
    %v354 = vmul.f32 %v212, %v223
    %v355 = vadd.f32 %v353, %v354
    %v356 = vsel %vm31, %v355, 0.0
    %357 = vadd.xlane.f32.xlu0 %v356
    %v358 = vpop.xlane.xlu0 %357
    %v359 = vrot.slane %v358, 4
    %v360 = vadd.f32 %v358, %v359
    %v361 = vrot.slane %v360, 2
    %v362 = vadd.f32 %v360, %v361
    %v363 = vrot.slane %v362, 1
    %v364 = vadd.f32 %v362, %v363
    %s365 = vtos %v364
    %v366 = vsel %vm31, %v234, -inf
    %367 = vmax.xlane.f32.xlu0 %v366
    %v368 = vpop.xlane.xlu0 %367
    %vm369 = vcmask 3072
    %v370 = vsel %vm369, %v368, 0.0
    %371 = vadd.xlane.f32.xlu0 %v370
    %v372 = vpop.xlane.xlu0 %371
    %v373 = vrot.slane %v372, 4
    %v374 = vadd.f32 %v372, %v373
    %v375 = vrot.slane %v374, 2
    %v376 = vadd.f32 %v374, %v375
    %v377 = vrot.slane %v376, 1
    %v378 = vadd.f32 %v376, %v377
    %s379 = vtos %v378
    %v380 = vmul.f32 %v102, %v201
    %v381 = vadd.f32 %v380, 0.0
    %v382 = vmul.f32 %v380, 0.0
    %v383 = vsub.f32 %v381, %v382
    %v384 = vmul.f32 %v103, %v200
    %v385 = vadd.f32 %v383, %v384
    %v386 = vmul.f32 %v383, %v384
    %v387 = vsub.f32 %v385, %v386
    %v388 = vmul.f32 %v104, %v199
    %v389 = vadd.f32 %v387, %v388
    %v390 = vmul.f32 %v387, %v388
    %v391 = vsub.f32 %v389, %v390
    %v392 = vmul.f32 %v105, %v198
    %v393 = vadd.f32 %v391, %v392
    %v394 = vmul.f32 %v391, %v392
    %v395 = vsub.f32 %v393, %v394
    %v396 = vmul.f32 %v106, %v197
    %v397 = vadd.f32 %v395, %v396
    %v398 = vmul.f32 %v395, %v396
    %v399 = vsub.f32 %v397, %v398
    %v400 = vmul.f32 %v107, %v196
    %v401 = vadd.f32 %v399, %v400
    %v402 = vmul.f32 %v399, %v400
    %v403 = vsub.f32 %v401, %v402
    %v404 = vmul.f32 %v108, %v195
    %v405 = vadd.f32 %v403, %v404
    %v406 = vmul.f32 %v403, %v404
    %v407 = vsub.f32 %v405, %v406
    %v408 = vmul.f32 %v109, %v194
    %v409 = vadd.f32 %v407, %v408
    %v410 = vmul.f32 %v407, %v408
    %v411 = vsub.f32 %v409, %v410
    %v412 = vmul.f32 %v110, %v193
    %v413 = vadd.f32 %v411, %v412
    %v414 = vmul.f32 %v411, %v412
    %v415 = vsub.f32 %v413, %v414
    %v416 = vmul.f32 %v111, %v192
    %v417 = vadd.f32 %v415, %v416
    %v418 = vmul.f32 %v415, %v416
    %v419 = vsub.f32 %v417, %v418
    %v420 = vsub.f32 1.0, %v234
    %v421 = vmul.f32 %v234, %v419
    %v422 = vadd.f32 %v420, %v421
    %v423 = vsel %vm31, %v422, 0.0
    %424 = vadd.xlane.f32.xlu0 %v423
    %v425 = vpop.xlane.xlu0 %424
    %v426 = vrot.slane %v425, 4
    %v427 = vadd.f32 %v425, %v426
    %v428 = vrot.slane %v427, 2
    %v429 = vadd.f32 %v427, %v428
    %v430 = vrot.slane %v429, 1
    %v431 = vadd.f32 %v429, %v430
    %s432 = vtos %v431
    %v433 = vlaneseq
    %v434 = vshrl.u32 %v433, 7
    %v435 = vlaneseq
    %v436 = vand.u32 %v435, 127
    %v437 = vmul.u32 %v434, 128
    %v438 = vadd.s32 %v437, %v436
    %vm439 = vcmp.eq.s32.totalorder %v438, 0
    %vm440 = vcmp.eq.s32.totalorder %v438, 1
    %vm441 = vcmp.eq.s32.totalorder %v438, 2
    %vm442 = vcmp.eq.s32.totalorder %v438, 3
    %v443 = vstv %s432
    %v444 = vsel %vm442, %v443, 0.0
    %v445 = vstv %s379
    %v446 = vsel %vm441, %v445, %v444
    %v447 = vstv %s365
    %v448 = vsel %vm440, %v447, %v446
    %v449 = vstv %s352
    %v450 = vsel %vm439, %v449, %v448
    %451 = vst [vmem:[#allocation2] sm:$0xff] %v450
    // Predicated region
    $region22: #{tpu_custom_call.1} parent=1 // pred_check
      _
    $region23: #{tpu_custom_call.1} parent=1 // pred_check_branch
      %453 = sbr.rel (0) target = $region25
    $region24: #{tpu_custom_call.1} parent=1 // pred_region
      %s455 = ssub.s32 128, 128
      %456 = vsyncadd [#allocation3], %s455
      %s458 = sshll.u32 [#allocation2], 4
      %s459 = int_to_ptr.vmem [resolvable:$true] %s458
      %461 = dma.vmem_to_hbm [thread:$0]  %s459, 128, %s5, [#allocation3]
    $region25: #{tpu_custom_call.1} parent=1 // pred_fallthru
      _
    // Predicated region
    $region26: #{tpu_custom_call.1} parent=1 // pred_check
      _
    $region27: #{tpu_custom_call.1} parent=1 // pred_check_branch
      %463 = sbr.rel (0) target = $region29
    $region28: #{tpu_custom_call.1} parent=1 // pred_region
      %464 = dma.done [#allocation3], 128
    $region29: #{tpu_custom_call.1} parent=1 // pred_fallthru
      _
    %465 = vsyncpa [#allocation3], 1

</llo_original>
